<compile_context>
chip_gen: v5e
topology: v5e:2x2
jax: 0.10.0
libtpu: 0.0.40
codegen_flags: <defaults>
</compile_context>

<pallas_src>
import functools

import jax
import jax.numpy as jnp
from jax.experimental import pallas as pl
from jax.experimental.pallas import tpu as pltpu

NEG_SLOPE = 0.3
BN_EPS = 1e-5
C = 32  # CRBlock.channels (fixed by the module)

# Tap sets (dh, dw) for each conv ('same' padding, cross-correlation).
TAPS_3x3 = [(dh, dw) for dh in (-1, 0, 1) for dw in (-1, 0, 1)]
TAPS_1x5 = [(0, dw) for dw in (-2, -1, 0, 1, 2)]
TAPS_UNION = TAPS_3x3 + [(0, -2), (0, 2)]          # conv3x3 ∪ conv1x5 (11 taps)
TAPS_1x9 = [(0, dw) for dw in range(-4, 5)]
TAPS_3x1 = [(-1, 0), (0, 0), (1, 0)]


def _lrelu(v):
    return jnp.where(v > 0, v, NEG_SLOPE * v)


# ---------------------------------------------------------------------------
# One-off probe: does pltpu.roll follow np.roll semantics?  (Makes the tap
# shifts robust to the rotate-direction convention of the installed jax.)
# ---------------------------------------------------------------------------
_ROLL_IS_NP = None


def _roll_is_np():
    global _ROLL_IS_NP
    if _ROLL_IS_NP is None:
        def k(x_ref, o_ref):
            o_ref[...] = pltpu.roll(x_ref[...], 1, 1)

        with jax.ensure_compile_time_eval():
            x = jnp.tile(jnp.arange(128, dtype=jnp.float32)[None, :], (8, 1))
            out = pl.pallas_call(
                k, out_shape=jax.ShapeDtypeStruct((8, 128), jnp.float32))(x)
            # np.roll: out[:, 1] == x[:, 0] == 0
            _ROLL_IS_NP = bool(out[0, 1] == 0.0)
    return _ROLL_IS_NP


# ---------------------------------------------------------------------------
# Fused Pallas kernel: the entire CRBlock for one batch tile per grid step.
# ---------------------------------------------------------------------------
def _crblock_kernel(x_ref,
                    wx_ref, bx_ref, w19_ref, b19_ref,
                    wp_ref, bp_ref, w11_ref, b11_ref,
                    o_ref,
                    xf_ref, patch_ref,
                    *, H, W, roll_np):
    """All refs are VMEM.

    Layout: activations are (channels, B*H*W) -> channels on sublanes, all
    spatial positions of the batch tile dense on the lane axis.

    x_ref    : (B, C, L) input block, L = H*W
    w*_ref   : bf16 BN-folded, tap-stacked weight matrices
    b*_ref   : (rows, 1) f32 folded conv+BN biases
    o_ref    : (B, C, L) output block
    xf_ref   : (C, B*L) f32 scratch (lane-flattened input / residual source)
    patch_ref: (11*C, B*L) bf16 scratch holding the current im2col patch
    """
    B, Cc, L = x_ref.shape
    BL = B * L

    # ---- flatten the batch tile into the lane axis: (B, C, L) -> (C, B*L) --
    if B == 1:
        x = x_ref[0].astype(jnp.float32)
    else:
        for b in range(B):
            xf_ref[:, b * L:(b + 1) * L] = x_ref[b].astype(jnp.float32)
        x = xf_ref[...]

    # ---- boundary masks: built once, pruned, shared by all convs -----------
    col = jax.lax.broadcasted_iota(jnp.int32, (1, BL), 1)
    h_idx = (col % L) // W
    w_idx = col % W
    mask_cache = {}

    def get_mask(dh, dw):
        if (dh, dw) not in mask_cache:
            m = None
            if dh != 0:
                m = (h_idx + dh >= 0) & (h_idx + dh < H)
            if dw != 0:
                mw = (w_idx + dw >= 0) & (w_idx + dw < W)
                m = mw if m is None else (m & mw)
            mask_cache[(dh, dw)] = m
        return mask_cache[(dh, dw)]

    def put_taps(v, taps, row0):
        """Write shifted + masked taps of v (C, BL) into patch_ref (bf16)."""
        for i, (dh, dw) in enumerate(taps):
            s = dh * W + dw
            if s == 0:
                t = v
            else:
                shift = (-s) % BL if roll_np else s % BL
                t = pltpu.roll(v, shift, 1)          # XLU rotate, lane axis
            m = get_mask(dh, dw)
            if m is not None:
                t = jnp.where(m, t, 0.0)
            r = row0 + i * Cc
            patch_ref[r:r + Cc, :] = t.astype(patch_ref.dtype)

    def mm(w_ref, b_ref, k_rows):
        return jnp.dot(w_ref[...], patch_ref[:k_rows, :],
                       preferred_element_type=jnp.float32) + b_ref[...]

    # ---- stage 1: conv3x3(x) & conv1x5(x) fused over the union tap set -----
    put_taps(x, TAPS_UNION, 0)
    a1 = _lrelu(mm(wx_ref, bx_ref, len(TAPS_UNION) * Cc))      # (2C, BL)
    h1, h2 = a1[:Cc], a1[Cc:]

    # ---- stage 2: conv1x9 on path1 ------------------------------------------
    put_taps(h1, TAPS_1x9, 0)
    h1 = _lrelu(mm(w19_ref, b19_ref, len(TAPS_1x9) * Cc))      # (C, BL)

    # ---- stage 3: both [3,1] convs as one block-diagonal matmul (= cat) -----
    put_taps(h1, TAPS_3x1, 0)
    put_taps(h2, TAPS_3x1, len(TAPS_3x1) * Cc)
    cat = _lrelu(mm(wp_ref, bp_ref, 2 * len(TAPS_3x1) * Cc))   # (2C, BL)

    # ---- stage 4: 1x1 conv + BN, residual, lrelu -----------------------------
    y = jnp.dot(w11_ref[...], cat.astype(w11_ref.dtype),
                preferred_element_type=jnp.float32) + b11_ref[...]
    y = _lrelu(y + x)                                           # (C, BL)
    for b in range(B):
        o_ref[b] = y[:, b * L:(b + 1) * L].astype(o_ref.dtype)


# ---------------------------------------------------------------------------
# Wrapper: fold BN, pack tap-stacked bf16 weight matrices, one pallas_call
# ---------------------------------------------------------------------------
# TODO(synk): BatchNorm is folded with running-stats (eval-mode) semantics;
# training-mode batch statistics are not computed in-kernel.
def _fold_conv_taps(p, kh, kw):
    """Fold BN into per-tap conv weights.

    Returns ({(dh, dw): (Cout, Cin) f32 weight block}, bias (Cout,) f32).
    """
    w = p['w']                                        # (kh, kw, cin, cout)
    scale = p['gamma'] / jnp.sqrt(p['var'] + BN_EPS)  # (cout,)
    bias = (p['b'] - p['mean']) * scale + p['beta']
    ph, pw = (kh - 1) // 2, (kw - 1) // 2
    taps = {}
    for a in range(kh):
        for b in range(kw):
            taps[(a - ph, b - pw)] = w[a, b].T * scale[:, None]
    return taps, bias


def _pack_taps(taps, tap_order, cout, cin):
    z = jnp.zeros((cout, cin), jnp.float32)
    return jnp.concatenate([taps.get(t, z) for t in tap_order], axis=1)


def _pick_batch_tile(n, max_tile=8):
    best = 1
    for b in range(1, min(n, max_tile) + 1):
        # keep grid >= 2 so the "parallel" axis still shards across v7x's 2 TCs
        if n % b == 0 and n // b >= 2:
            best = b
    return best


def crblock_pallas(x_nchw, params, max_batch_tile=8):
    N, Cc, H, W = x_nchw.shape
    L = H * W
    B = _pick_batch_tile(N, max_batch_tile)
    x2 = x_nchw.reshape(N, Cc, L)        # trailing-dim collapse: no transpose

    t33, b33 = _fold_conv_taps(params['p1_conv3x3'], 3, 3)
    t19, b19 = _fold_conv_taps(params['p1_conv1x9'], 1, 9)
    t31a, b31a = _fold_conv_taps(params['p1_conv9x1'], 3, 1)  # module uses [3,1]
    t15, b15 = _fold_conv_taps(params['p2_conv1x5'], 1, 5)
    t31b, b31b = _fold_conv_taps(params['p2_conv5x1'], 3, 1)  # module uses [3,1]
    t11, b11 = _fold_conv_taps(params['conv1x1'], 1, 1)

    bf16 = jnp.bfloat16
    # conv3x3 + conv1x5 stacked over the union tap set: (2C, 11*C)
    wx = jnp.concatenate([_pack_taps(t33, TAPS_UNION, Cc, Cc),
                          _pack_taps(t15, TAPS_UNION, Cc, Cc)],
                         axis=0).astype(bf16)
    bx = jnp.concatenate([b33, b15])[:, None]
    # conv1x9: (C, 9*C)
    w19 = _pack_taps(t19, TAPS_1x9, Cc, Cc).astype(bf16)
    b19v = b19[:, None]
    # the two [3,1] convs block-diagonal: (2C, 2*3*C)
    wa = _pack_taps(t31a, TAPS_3x1, Cc, Cc)
    wb = _pack_taps(t31b, TAPS_3x1, Cc, Cc)
    z = jnp.zeros_like(wa)
    wp = jnp.concatenate([jnp.concatenate([wa, z], axis=1),
                          jnp.concatenate([z, wb], axis=1)],
                         axis=0).astype(bf16)
    bp = jnp.concatenate([b31a, b31b])[:, None]
    # 1x1 conv: (C, 2C)
    w11 = t11[(0, 0)].astype(bf16)
    b11v = b11[:, None]

    consts = (wx, bx, w19, b19v, wp, bp, w11, b11v)

    kern = functools.partial(_crblock_kernel, H=H, W=W, roll_np=_roll_is_np())
    out = pl.pallas_call(
        kern,
        out_shape=jax.ShapeDtypeStruct((N, Cc, L), x_nchw.dtype),
        grid=(N // B,),
        in_specs=[pl.BlockSpec((B, Cc, L), lambda n: (n, 0, 0))] +
                 [pl.BlockSpec(a.shape, lambda n: (0, 0)) for a in consts],
        out_specs=pl.BlockSpec((B, Cc, L), lambda n: (n, 0, 0)),
        scratch_shapes=[
            pltpu.VMEM((Cc, B * L), jnp.float32),                    # xf
            pltpu.VMEM((len(TAPS_UNION) * Cc, B * L), jnp.bfloat16),  # patch
        ],
        compiler_params=pltpu.CompilerParams(
            dimension_semantics=("parallel",)),
    )(x2, *consts)
    return out.reshape(N, Cc, H, W)


# ---------------------------------------------------------------------------
# Deterministic parameter init (synthetic; no checkpoint load)
# ---------------------------------------------------------------------------
def init_convbn(key, cin, cout, kh, kw):
    k1, k2, k3, k4, k5, k6 = jax.random.split(key, 6)
    return dict(
        w=jax.random.normal(k1, (kh, kw, cin, cout), jnp.float32) * 0.05,
        b=jax.random.normal(k2, (cout,), jnp.float32) * 0.05,
        gamma=1.0 + 0.1 * jax.random.normal(k3, (cout,), jnp.float32),
        beta=0.1 * jax.random.normal(k4, (cout,), jnp.float32),
        mean=0.1 * jax.random.normal(k5, (cout,), jnp.float32),
        var=jnp.abs(jax.random.normal(k6, (cout,), jnp.float32)) * 0.1 + 0.9,
    )


def init_params(key):
    ks = jax.random.split(key, 6)
    return {
        'p1_conv3x3': init_convbn(ks[0], C, C, 3, 3),
        'p1_conv1x9': init_convbn(ks[1], C, C, 1, 9),
        'p1_conv9x1': init_convbn(ks[2], C, C, 3, 1),   # kernel [3,1] per module
        'p2_conv1x5': init_convbn(ks[3], C, C, 1, 5),
        'p2_conv5x1': init_convbn(ks[4], C, C, 3, 1),   # kernel [3,1] per module
        'conv1x1':    init_convbn(ks[5], 2 * C, C, 1, 1),
    }


# ---------------------------------------------------------------------------
# Pure-JAX reference (correctness check only)
# ---------------------------------------------------------------------------
def _convbn_ref(x, p, kh, kw):
    ph, pw = (kh - 1) // 2, (kw - 1) // 2
    y = jax.lax.conv_general_dilated(
        x, p['w'], (1, 1), [(ph, ph), (pw, pw)],
        dimension_numbers=('NHWC', 'HWIO', 'NHWC'))
    y = y + p['b']
    return (y - p['mean']) / jnp.sqrt(p['var'] + BN_EPS) * p['gamma'] + p['beta']


def crblock_ref(x_nchw, params):
    x = jnp.transpose(x_nchw, (0, 2, 3, 1))
    h = _lrelu(_convbn_ref(x, params['p1_conv3x3'], 3, 3))
    h = _lrelu(_convbn_ref(h, params['p1_conv1x9'], 1, 9))
    out1 = _convbn_ref(h, params['p1_conv9x1'], 3, 1)
    g = _lrelu(_convbn_ref(x, params['p2_conv1x5'], 1, 5))
    out2 = _convbn_ref(g, params['p2_conv5x1'], 3, 1)
    out = _lrelu(jnp.concatenate([out1, out2], axis=-1))
    out = _convbn_ref(out, params['conv1x1'], 1, 1)
    out = _lrelu(out + x)
    return jnp.transpose(out, (0, 3, 1, 2))


if __name__ == "__main__":
    key = jax.random.PRNGKey(0)
    kx, kp = jax.random.split(key)
    # NCHW; channels fixed at 32 by the module; small spatial 16x16, batch 4
    # (batch 4 -> batch tile 2, grid 2: exercises the batch-tiled path).
    x = jax.random.normal(kx, (4, C, 16, 16), jnp.float32)
    params = init_params(kp)

    _roll_is_np()                      # resolve roll direction once, outside jit

    fwd = jax.jit(crblock_pallas)
    out = jax.block_until_ready(fwd(x, params))
    ref = crblock_ref(x, params)

    assert out.shape == x.shape, out.shape
    err = float(jnp.max(jnp.abs(out - ref)))
    # bf16 MXU path with f32 accumulation vs f32 reference -> loose tolerance.
    assert jnp.allclose(out, ref, atol=1e-1, rtol=2e-2), f"max abs err {err}"
    print("KERNEL_OK")
</pallas_src>

<mosaic_0001>
module attributes {stable_mosaic.version = 11 : i64} {
  func.func @k(%arg0: memref<8x128xf32, #tpu.memory_space<vmem>>, %arg1: memref<8x128xf32, #tpu.memory_space<vmem>>) attributes {dimension_semantics = [], scalar_prefetch = 0 : i64, scratch_operands = 0 : i64, tpu.core_type = #tpu.core_type<tc>} {
    %c0 = arith.constant 0 : index
    %c0_0 = arith.constant 0 : index
    %0 = vector.load %arg0[%c0, %c0_0] : memref<8x128xf32, #tpu.memory_space<vmem>>, vector<8x128xf32>
    %c1_i32 = arith.constant 1 : i32
    %1 = tpu.dynamic_rotate %0 by %c1_i32 dim 1 : vector<8x128xf32>, i32 -> vector<8x128xf32>
    %c0_1 = arith.constant 0 : index
    %c0_2 = arith.constant 0 : index
    %2 = vector.load %arg1[%c0_1, %c0_2] : memref<8x128xf32, #tpu.memory_space<vmem>>, vector<8x128xf32>
    tpu.vector_store %arg1[%c0_1, %c0_2], %1 {strides = array<i32>} : memref<8x128xf32, #tpu.memory_space<vmem>>, vector<8x128xf32>,
    return
  }
}

</mosaic_0001>

<llo_original>
// kernel: tpu_custom_call.1
$region0: #{tpu_custom_call.1}
  #allocation0 [shape = 'u32[]', space=smem, size = 0x4, offset = 0x4, fixed_abs, tag = 'smem constant byte address 0x4 - core index']
  #allocation1 [shape = 'u32[72,128]{1,0:T(1,128)}', space=vmem, size = 0x9000, scoped, tag = 'internal scratch']
  %s0 = inlined_call_operand.hbm [shape: f32[8,128], index: 0, kind: input, shape index: {}]
  %s1 = inlined_call_operand.hbm [shape: f32[8,128], index: 1, kind: output, shape index: {}]
  %s2 = sld [smem:[#allocation0]]
  $region18: #{tpu_custom_call.1} parent=0
    _
  %s4 = ssub.s32 1, %s2
  %s5 = scalar_select 0, %s4, %s2
  $region1: #{tpu_custom_call.1} parent=0
    #allocation2 [shape = 'u8[4096]{0}', space=vmem, size = 0x1000, scoped, tag = 'input window, operand 0, single buffered']
    #allocation3 [shape = 's32[1]{0}', space=sflag, size = 0x4, scoped, tag = 'scoped memory for tpu_custom_call.1']
    #allocation4 [shape = 's32[1]{0}', space=sflag, size = 0x4, scoped, tag = 'scoped memory for tpu_custom_call.1']
    #allocation5 [shape = 'u8[4096]{0}', space=vmem, size = 0x1000, scoped, tag = 'output window, operand 0, single buffered']
    %6 = vsyncpa [#allocation3], 0
    %7 = vsyncpa [#allocation4], 0
    // Predicated region
    $region2: #{tpu_custom_call.1} parent=1 // pred_check
      _
    $region3: #{tpu_custom_call.1} parent=1 // pred_check_branch
      %9 = sbr.rel (0) target = $region5
    $region4: #{tpu_custom_call.1} parent=1 // pred_region
      %11 = vsyncadd [#allocation3], 0
      %s13 = sshll.u32 %s0, 4
      %s14 = int_to_ptr.hbm [resolvable:$true] %s13
      %s15 = sshll.u32 [#allocation2], 4
      %s16 = int_to_ptr.vmem [resolvable:$true] %s15
      %18 = dma.hbm_to_vmem [thread:$0]  %s14, 128, %s16, [#allocation3]
    $region5: #{tpu_custom_call.1} parent=1 // pred_fallthru
      _
    // Predicated region
    $region6: #{tpu_custom_call.1} parent=1 // pred_check
      _
    $region7: #{tpu_custom_call.1} parent=1 // pred_check_branch
      %20 = sbr.rel (0) target = $region9
    $region8: #{tpu_custom_call.1} parent=1 // pred_region
      %22 = dma.done [#allocation3], 128
    $region9: #{tpu_custom_call.1} parent=1 // pred_fallthru
      _
    %v23 = vld [vmem:[#allocation2] sm:$0xff]
    %24 = vrot.lane.b32.xlu0 %v23, 1
    %v25 = vpop.permute.xlu0 %24
    %26 = vst [vmem:[#allocation5] sm:$0xff] %v25
    // Predicated region
    $region10: #{tpu_custom_call.1} parent=1 // pred_check
      _
    $region11: #{tpu_custom_call.1} parent=1 // pred_check_branch
      %28 = sbr.rel (0) target = $region13
    $region12: #{tpu_custom_call.1} parent=1 // pred_region
      %30 = vsyncadd [#allocation4], 0
      %s32 = sshll.u32 [#allocation5], 4
      %s33 = int_to_ptr.vmem [resolvable:$true] %s32
      %s34 = sshll.u32 %s1, 4
      %s35 = int_to_ptr.hbm [resolvable:$true] %s34
      %37 = dma.vmem_to_hbm [thread:$0]  %s33, 128, %s35, [#allocation4]
    $region13: #{tpu_custom_call.1} parent=1 // pred_fallthru
      _
    // Predicated region
    $region14: #{tpu_custom_call.1} parent=1 // pred_check
      _
    $region15: #{tpu_custom_call.1} parent=1 // pred_check_branch
      %39 = sbr.rel (0) target = $region17
    $region16: #{tpu_custom_call.1} parent=1 // pred_region
      %41 = dma.done [#allocation4], 128
    $region17: #{tpu_custom_call.1} parent=1 // pred_fallthru
      _
    %42 = vsyncpa [#allocation3], 1
    %43 = vsyncpa [#allocation4], 1

</llo_original>
